<compile_context>
chip_gen: v5e
topology: v5e:2x2
jax: 0.10.0
libtpu: 0.0.40
codegen_flags: <defaults>
</compile_context>

<pallas_src>
import math

import jax
import jax.numpy as jnp
from jax.experimental import pallas as pl
from jax.experimental.pallas import tpu as pltpu

SQRT_HALF = math.sqrt(0.5)


def _resblock_kernel(x_ref, spkb_ref, wf_ref, wg_ref, bf_ref, bg_ref,
                     out_ref, xp_ref):
    # x_ref   : (H, T)        input tile (also the residual; H == C)
    # spkb_ref: (C, 1)        precomputed speaker bias for this batch element
    # wf_ref  : (K, C, H)     conv weight, filter half, per-tap matrices
    # wg_ref  : (K, C, H)     conv weight, gate half, per-tap matrices
    # bf_ref  : (C, 1)        conv bias, filter half
    # bg_ref  : (C, 1)        conv bias, gate half
    # out_ref : (C, T)
    # xp_ref  : (H, T + K-1)  VMEM scratch: zero-padded copy of x (halo)
    C, T = out_ref.shape
    H = x_ref.shape[0]
    K = wf_ref.shape[0]
    pad = (K - 1) // 2

    x = x_ref[...]  # (H, T); H == C so this is also the residual

    # Build the zero-padded operand in VMEM (no HBM pad copy).
    if pad > 0:
        edge = jnp.zeros((H, pad), x.dtype)
        xp_ref[:, 0:pad] = edge
        xp_ref[:, pad + T:T + 2 * pad] = edge
    xp_ref[:, pad:pad + T] = x

    # 1D conv as K shifted matmuls on the MXU, split into filter/gate halves.
    acc_f = jnp.zeros((C, T), jnp.float32)
    acc_g = jnp.zeros((C, T), jnp.float32)
    for k in range(K):  # static, unrolled over taps
        xs = xp_ref[:, k:k + T]  # (H, T) shifted window
        acc_f = acc_f + jnp.dot(wf_ref[k], xs,
                                preferred_element_type=jnp.float32)
        acc_g = acc_g + jnp.dot(wg_ref[k], xs,
                                preferred_element_type=jnp.float32)

    # tanh first, then speaker bias (matches the PyTorch module).
    h_filter = jnp.tanh(acc_f + bf_ref[...]) + spkb_ref[...]
    h_gate = jax.nn.sigmoid(acc_g + bg_ref[...])

    out = (h_filter * h_gate + x) * SQRT_HALF
    out_ref[...] = out.astype(out_ref.dtype)


def resblock_pallas(x, spkr_vec, conv_w, conv_b, fc_w, fc_b):
    """x: (N, H, T) float32; spkr_vec: (N, 1, S); conv_w: (2C, H, K);
       conv_b: (2C,); fc_w: (C, S); fc_b: (C,). Returns (N, C, T)."""
    N, H, T = x.shape
    two_c, H_w, K = conv_w.shape
    C = two_c // 2
    assert H_w == H
    assert C == H, "residual add requires in_channels == out_channels"
    pad = (K - 1) // 2

    x = x.astype(jnp.float32)

    # Speaker FC hoisted out of the kernel: one batched GEMM for all N.
    spkr_bias = (spkr_vec[:, 0, :].astype(jnp.float32) @ fc_w.T
                 + fc_b)[..., None]                       # (N, C, 1)
    spkr_bias = spkr_bias.astype(jnp.float32)

    # Per-tap weight matrices, split into filter / gate halves.
    w_k = jnp.transpose(conv_w, (2, 0, 1)).astype(jnp.float32)   # (K, 2C, H)
    wf = w_k[:, :C, :]                                           # (K, C, H)
    wg = w_k[:, C:, :]                                           # (K, C, H)
    bf = conv_b[:C].reshape(C, 1).astype(jnp.float32)
    bg = conv_b[C:].reshape(C, 1).astype(jnp.float32)

    cost = pl.CostEstimate(
        flops=2 * N * two_c * H * K * T,
        transcendentals=2 * N * C * T,
        bytes_accessed=4 * (x.size + N * C * T + wf.size + wg.size
                            + spkr_bias.size + bf.size + bg.size),
    )

    return pl.pallas_call(
        _resblock_kernel,
        out_shape=jax.ShapeDtypeStruct((N, C, T), jnp.float32),
        grid=(N,),
        in_specs=[
            pl.BlockSpec((None, H, T), lambda n: (n, 0, 0)),   # x (+ residual)
            pl.BlockSpec((None, C, 1), lambda n: (n, 0, 0)),   # speaker bias
            pl.BlockSpec((K, C, H), lambda n: (0, 0, 0)),      # W filter
            pl.BlockSpec((K, C, H), lambda n: (0, 0, 0)),      # W gate
            pl.BlockSpec((C, 1), lambda n: (0, 0)),            # b filter
            pl.BlockSpec((C, 1), lambda n: (0, 0)),            # b gate
        ],
        out_specs=pl.BlockSpec((None, C, T), lambda n: (n, 0, 0)),
        scratch_shapes=[pltpu.VMEM((H, T + 2 * pad), jnp.float32)],
        compiler_params=pltpu.CompilerParams(
            dimension_semantics=("parallel",),
            vmem_limit_bytes=48 * 1024 * 1024),
        cost_estimate=cost,
    )(x, spkr_bias, wf, wg, bf, bg)


def resblock_ref(x, spkr_vec, conv_w, conv_b, fc_w, fc_b):
    """Pure-JAX reference mirroring the PyTorch forward (eval mode)."""
    two_c = conv_w.shape[0]
    C = two_c // 2
    K = conv_w.shape[2]
    pad = (K - 1) // 2
    conv_out = jax.lax.conv_general_dilated(
        x, conv_w, window_strides=(1,), padding=[(pad, pad)],
        dimension_numbers=("NCH", "OIH", "NCH"))
    conv_out = conv_out + conv_b[None, :, None]
    h_filter = jnp.tanh(conv_out[:, :C])
    h_gate = jax.nn.sigmoid(conv_out[:, C:])
    spkr_bias = (spkr_vec[:, 0, :] @ fc_w.T + fc_b)[..., None]
    h_filter = h_filter + spkr_bias
    return (h_filter * h_gate + x) * SQRT_HALF


if __name__ == "__main__":
    # Small shapes consistent with the module: in_channels == out_channels
    # (residual add requires it).
    N, C, T = 2, 16, 128        # batch, channels (H == C), time
    K, S = 5, 8                 # kernel size (odd), speaker embedding size

    key = jax.random.PRNGKey(0)
    k_x, k_s, k_v, k_g, k_cb, k_fw, k_fb = jax.random.split(key, 7)

    x = jax.random.normal(k_x, (N, C, T), jnp.float32)
    spkr_vec = jax.random.normal(k_s, (N, 1, S), jnp.float32)

    # weight_norm(Conv1d): effective weight = g * v / ||v|| (norm per out-channel)
    v = jax.random.normal(k_v, (2 * C, C, K), jnp.float32) * 0.1
    g = 1.0 + 0.1 * jax.random.normal(k_g, (2 * C,), jnp.float32)
    v_norm = jnp.sqrt(jnp.sum(v * v, axis=(1, 2), keepdims=True))
    conv_w = g[:, None, None] * v / v_norm
    conv_b = 0.05 * jax.random.normal(k_cb, (2 * C,), jnp.float32)

    fc_w = 0.1 * jax.random.normal(k_fw, (C, S), jnp.float32)
    fc_b = 0.05 * jax.random.normal(k_fb, (C,), jnp.float32)

    out = resblock_pallas(x, spkr_vec, conv_w, conv_b, fc_w, fc_b)
    out = jax.block_until_ready(out)

    ref = resblock_ref(x, spkr_vec, conv_w, conv_b, fc_w, fc_b)
    assert out.shape == (N, C, T)
    assert jnp.max(jnp.abs(out - ref)) < 2e-4, "mismatch vs pure-JAX reference"

    print("KERNEL_OK")
</pallas_src>

<mosaic_0001>
module attributes {stable_mosaic.version = 11 : i64} {
  func.func @_resblock_kernel(%arg0: i32, %arg1: memref<1x16x128xf32, #tpu.memory_space<vmem>>, %arg2: memref<1x16x1xf32, #tpu.memory_space<vmem>>, %arg3: memref<5x16x16xf32, #tpu.memory_space<vmem>>, %arg4: memref<5x16x16xf32, #tpu.memory_space<vmem>>, %arg5: memref<16x1xf32, #tpu.memory_space<vmem>>, %arg6: memref<16x1xf32, #tpu.memory_space<vmem>>, %arg7: memref<1x16x128xf32, #tpu.memory_space<vmem>>, %arg8: memref<16x132xf32, #tpu.memory_space<vmem>>) attributes {dimension_semantics = [#tpu.dimension_semantics<parallel>], iteration_bounds = array<i64: 2>, scalar_prefetch = 0 : i64, scratch_operands = 1 : i64, tpu.core_type = #tpu.core_type<tc>, window_params = [{transform_indices = @transform_0, window_bounds = array<i64: 1, 16, 128>}, {transform_indices = @transform_1, window_bounds = array<i64: 1, 16, 1>}, {pipeline_mode = #tpu.pipeline_mode<synchronous>, transform_indices = @transform_2, window_bounds = array<i64: 5, 16, 16>}, {pipeline_mode = #tpu.pipeline_mode<synchronous>, transform_indices = @transform_3, window_bounds = array<i64: 5, 16, 16>}, {pipeline_mode = #tpu.pipeline_mode<synchronous>, transform_indices = @transform_4, window_bounds = array<i64: 16, 1>}, {pipeline_mode = #tpu.pipeline_mode<synchronous>, transform_indices = @transform_5, window_bounds = array<i64: 16, 1>}, {transform_indices = @transform_6, window_bounds = array<i64: 1, 16, 128>}]} {
    %c0 = arith.constant 0 : index
    %c0_0 = arith.constant 0 : index
    %c0_1 = arith.constant 0 : index
    %0 = vector.load %arg1[%c0, %c0_0, %c0_1] : memref<1x16x128xf32, #tpu.memory_space<vmem>>, vector<1x16x128xf32>
    %1 = vector.shape_cast %0 : vector<1x16x128xf32> to vector<16x128xf32>
    %cst = arith.constant 0.000000e+00 : f32
    %2 = vector.broadcast %cst : f32 to vector<16x2xf32>
    %c0_2 = arith.constant 0 : index
    %c0_3 = arith.constant 0 : index
    %3 = vector.load %arg8[%c0_2, %c0_3] : memref<16x132xf32, #tpu.memory_space<vmem>>, vector<16x2xf32>
    tpu.vector_store %arg8[%c0_2, %c0_3], %2 {strides = array<i32>} : memref<16x132xf32, #tpu.memory_space<vmem>>, vector<16x2xf32>,
    %c0_4 = arith.constant 0 : index
    %c130 = arith.constant 130 : index
    %4 = vector.load %arg8[%c0_4, %c130] : memref<16x132xf32, #tpu.memory_space<vmem>>, vector<16x2xf32>
    tpu.vector_store %arg8[%c0_4, %c130], %2 {strides = array<i32>} : memref<16x132xf32, #tpu.memory_space<vmem>>, vector<16x2xf32>,
    %c0_5 = arith.constant 0 : index
    %c2 = arith.constant 2 : index
    %5 = vector.load %arg8[%c0_5, %c2] : memref<16x132xf32, #tpu.memory_space<vmem>>, vector<16x128xf32>
    tpu.vector_store %arg8[%c0_5, %c2], %1 {strides = array<i32>} : memref<16x132xf32, #tpu.memory_space<vmem>>, vector<16x128xf32>,
    %cst_6 = arith.constant 0.000000e+00 : f32
    %6 = vector.broadcast %cst_6 : f32 to vector<16x128xf32>
    %cst_7 = arith.constant 0.000000e+00 : f32
    %7 = vector.broadcast %cst_7 : f32 to vector<16x128xf32>
    %c0_8 = arith.constant 0 : index
    %c0_9 = arith.constant 0 : index
    %8 = vector.load %arg8[%c0_8, %c0_9] : memref<16x132xf32, #tpu.memory_space<vmem>>, vector<16x128xf32>
    %c0_10 = arith.constant 0 : index
    %c0_11 = arith.constant 0 : index
    %c0_12 = arith.constant 0 : index
    %9 = vector.load %arg3[%c0_10, %c0_11, %c0_12] : memref<5x16x16xf32, #tpu.memory_space<vmem>>, vector<1x16x16xf32>
    %10 = vector.shape_cast %9 : vector<1x16x16xf32> to vector<16x16xf32>
    %cst_13 = arith.constant dense<0.000000e+00> : vector<16x128xf32>
    %11 = tpu.matmul %10, %8, %cst_13 {dimension_numbers = #tpu.dot_dimension_numbers<[1], [0], [0], [1], [0, 0, 1, 1], [], []>} : vector<16x16xf32>, vector<16x128xf32>, vector<16x128xf32> -> vector<16x128xf32>
    %12 = arith.addf %6, %11 : vector<16x128xf32>
    %c0_14 = arith.constant 0 : index
    %c0_15 = arith.constant 0 : index
    %c0_16 = arith.constant 0 : index
    %13 = vector.load %arg4[%c0_14, %c0_15, %c0_16] : memref<5x16x16xf32, #tpu.memory_space<vmem>>, vector<1x16x16xf32>
    %14 = vector.shape_cast %13 : vector<1x16x16xf32> to vector<16x16xf32>
    %cst_17 = arith.constant dense<0.000000e+00> : vector<16x128xf32>
    %15 = tpu.matmul %14, %8, %cst_17 {dimension_numbers = #tpu.dot_dimension_numbers<[1], [0], [0], [1], [0, 0, 1, 1], [], []>} : vector<16x16xf32>, vector<16x128xf32>, vector<16x128xf32> -> vector<16x128xf32>
    %16 = arith.addf %7, %15 : vector<16x128xf32>
    %c0_18 = arith.constant 0 : index
    %c1 = arith.constant 1 : index
    %17 = vector.load %arg8[%c0_18, %c1] : memref<16x132xf32, #tpu.memory_space<vmem>>, vector<16x128xf32>
    %c1_19 = arith.constant 1 : index
    %c0_20 = arith.constant 0 : index
    %c0_21 = arith.constant 0 : index
    %18 = vector.load %arg3[%c1_19, %c0_20, %c0_21] : memref<5x16x16xf32, #tpu.memory_space<vmem>>, vector<1x16x16xf32>
    %19 = vector.shape_cast %18 : vector<1x16x16xf32> to vector<16x16xf32>
    %cst_22 = arith.constant dense<0.000000e+00> : vector<16x128xf32>
    %20 = tpu.matmul %19, %17, %cst_22 {dimension_numbers = #tpu.dot_dimension_numbers<[1], [0], [0], [1], [0, 0, 1, 1], [], []>} : vector<16x16xf32>, vector<16x128xf32>, vector<16x128xf32> -> vector<16x128xf32>
    %21 = arith.addf %12, %20 : vector<16x128xf32>
    %c1_23 = arith.constant 1 : index
    %c0_24 = arith.constant 0 : index
    %c0_25 = arith.constant 0 : index
    %22 = vector.load %arg4[%c1_23, %c0_24, %c0_25] : memref<5x16x16xf32, #tpu.memory_space<vmem>>, vector<1x16x16xf32>
    %23 = vector.shape_cast %22 : vector<1x16x16xf32> to vector<16x16xf32>
    %cst_26 = arith.constant dense<0.000000e+00> : vector<16x128xf32>
    %24 = tpu.matmul %23, %17, %cst_26 {dimension_numbers = #tpu.dot_dimension_numbers<[1], [0], [0], [1], [0, 0, 1, 1], [], []>} : vector<16x16xf32>, vector<16x128xf32>, vector<16x128xf32> -> vector<16x128xf32>
    %25 = arith.addf %16, %24 : vector<16x128xf32>
    %c0_27 = arith.constant 0 : index
    %c2_28 = arith.constant 2 : index
    %26 = vector.load %arg8[%c0_27, %c2_28] : memref<16x132xf32, #tpu.memory_space<vmem>>, vector<16x128xf32>
    %c2_29 = arith.constant 2 : index
    %c0_30 = arith.constant 0 : index
    %c0_31 = arith.constant 0 : index
    %27 = vector.load %arg3[%c2_29, %c0_30, %c0_31] : memref<5x16x16xf32, #tpu.memory_space<vmem>>, vector<1x16x16xf32>
    %28 = vector.shape_cast %27 : vector<1x16x16xf32> to vector<16x16xf32>
    %cst_32 = arith.constant dense<0.000000e+00> : vector<16x128xf32>
    %29 = tpu.matmul %28, %26, %cst_32 {dimension_numbers = #tpu.dot_dimension_numbers<[1], [0], [0], [1], [0, 0, 1, 1], [], []>} : vector<16x16xf32>, vector<16x128xf32>, vector<16x128xf32> -> vector<16x128xf32>
    %30 = arith.addf %21, %29 : vector<16x128xf32>
    %c2_33 = arith.constant 2 : index
    %c0_34 = arith.constant 0 : index
    %c0_35 = arith.constant 0 : index
    %31 = vector.load %arg4[%c2_33, %c0_34, %c0_35] : memref<5x16x16xf32, #tpu.memory_space<vmem>>, vector<1x16x16xf32>
    %32 = vector.shape_cast %31 : vector<1x16x16xf32> to vector<16x16xf32>
    %cst_36 = arith.constant dense<0.000000e+00> : vector<16x128xf32>
    %33 = tpu.matmul %32, %26, %cst_36 {dimension_numbers = #tpu.dot_dimension_numbers<[1], [0], [0], [1], [0, 0, 1, 1], [], []>} : vector<16x16xf32>, vector<16x128xf32>, vector<16x128xf32> -> vector<16x128xf32>
    %34 = arith.addf %25, %33 : vector<16x128xf32>
    %c0_37 = arith.constant 0 : index
    %c3 = arith.constant 3 : index
    %35 = vector.load %arg8[%c0_37, %c3] : memref<16x132xf32, #tpu.memory_space<vmem>>, vector<16x128xf32>
    %c3_38 = arith.constant 3 : index
    %c0_39 = arith.constant 0 : index
    %c0_40 = arith.constant 0 : index
    %36 = vector.load %arg3[%c3_38, %c0_39, %c0_40] : memref<5x16x16xf32, #tpu.memory_space<vmem>>, vector<1x16x16xf32>
    %37 = vector.shape_cast %36 : vector<1x16x16xf32> to vector<16x16xf32>
    %cst_41 = arith.constant dense<0.000000e+00> : vector<16x128xf32>
    %38 = tpu.matmul %37, %35, %cst_41 {dimension_numbers = #tpu.dot_dimension_numbers<[1], [0], [0], [1], [0, 0, 1, 1], [], []>} : vector<16x16xf32>, vector<16x128xf32>, vector<16x128xf32> -> vector<16x128xf32>
    %39 = arith.addf %30, %38 : vector<16x128xf32>
    %c3_42 = arith.constant 3 : index
    %c0_43 = arith.constant 0 : index
    %c0_44 = arith.constant 0 : index
    %40 = vector.load %arg4[%c3_42, %c0_43, %c0_44] : memref<5x16x16xf32, #tpu.memory_space<vmem>>, vector<1x16x16xf32>
    %41 = vector.shape_cast %40 : vector<1x16x16xf32> to vector<16x16xf32>
    %cst_45 = arith.constant dense<0.000000e+00> : vector<16x128xf32>
    %42 = tpu.matmul %41, %35, %cst_45 {dimension_numbers = #tpu.dot_dimension_numbers<[1], [0], [0], [1], [0, 0, 1, 1], [], []>} : vector<16x16xf32>, vector<16x128xf32>, vector<16x128xf32> -> vector<16x128xf32>
    %43 = arith.addf %34, %42 : vector<16x128xf32>
    %c0_46 = arith.constant 0 : index
    %c4 = arith.constant 4 : index
    %44 = vector.load %arg8[%c0_46, %c4] : memref<16x132xf32, #tpu.memory_space<vmem>>, vector<16x128xf32>
    %c4_47 = arith.constant 4 : index
    %c0_48 = arith.constant 0 : index
    %c0_49 = arith.constant 0 : index
    %45 = vector.load %arg3[%c4_47, %c0_48, %c0_49] : memref<5x16x16xf32, #tpu.memory_space<vmem>>, vector<1x16x16xf32>
    %46 = vector.shape_cast %45 : vector<1x16x16xf32> to vector<16x16xf32>
    %cst_50 = arith.constant dense<0.000000e+00> : vector<16x128xf32>
    %47 = tpu.matmul %46, %44, %cst_50 {dimension_numbers = #tpu.dot_dimension_numbers<[1], [0], [0], [1], [0, 0, 1, 1], [], []>} : vector<16x16xf32>, vector<16x128xf32>, vector<16x128xf32> -> vector<16x128xf32>
    %48 = arith.addf %39, %47 : vector<16x128xf32>
    %c4_51 = arith.constant 4 : index
    %c0_52 = arith.constant 0 : index
    %c0_53 = arith.constant 0 : index
    %49 = vector.load %arg4[%c4_51, %c0_52, %c0_53] : memref<5x16x16xf32, #tpu.memory_space<vmem>>, vector<1x16x16xf32>
    %50 = vector.shape_cast %49 : vector<1x16x16xf32> to vector<16x16xf32>
    %cst_54 = arith.constant dense<0.000000e+00> : vector<16x128xf32>
    %51 = tpu.matmul %50, %44, %cst_54 {dimension_numbers = #tpu.dot_dimension_numbers<[1], [0], [0], [1], [0, 0, 1, 1], [], []>} : vector<16x16xf32>, vector<16x128xf32>, vector<16x128xf32> -> vector<16x128xf32>
    %52 = arith.addf %43, %51 : vector<16x128xf32>
    %c0_55 = arith.constant 0 : index
    %c0_56 = arith.constant 0 : index
    %53 = vector.load %arg5[%c0_55, %c0_56] : memref<16x1xf32, #tpu.memory_space<vmem>>, vector<16x1xf32>
    %54 = vector.broadcast %53 : vector<16x1xf32> to vector<16x128xf32>
    %55 = arith.addf %48, %54 : vector<16x128xf32>
    %56 = math.tanh %55 : vector<16x128xf32>
    %c0_57 = arith.constant 0 : index
    %c0_58 = arith.constant 0 : index
    %c0_59 = arith.constant 0 : index
    %57 = vector.load %arg2[%c0_57, %c0_58, %c0_59] : memref<1x16x1xf32, #tpu.memory_space<vmem>>, vector<1x16x1xf32>
    %58 = vector.shape_cast %57 : vector<1x16x1xf32> to vector<16x1xf32>
    %59 = vector.broadcast %58 : vector<16x1xf32> to vector<16x128xf32>
    %60 = arith.addf %56, %59 : vector<16x128xf32>
    %c0_60 = arith.constant 0 : index
    %c0_61 = arith.constant 0 : index
    %61 = vector.load %arg6[%c0_60, %c0_61] : memref<16x1xf32, #tpu.memory_space<vmem>>, vector<16x1xf32>
    %62 = vector.broadcast %61 : vector<16x1xf32> to vector<16x128xf32>
    %63 = arith.addf %52, %62 : vector<16x128xf32>
    %64 = arith.negf %63 : vector<16x128xf32>
    %65 = math.exp %64 : vector<16x128xf32>
    %cst_62 = arith.constant 1.000000e+00 : f32
    %66 = vector.broadcast %cst_62 : f32 to vector<16x128xf32>
    %67 = arith.addf %66, %65 : vector<16x128xf32>
    %68 = arith.divf %66, %67 : vector<16x128xf32>
    %69 = arith.mulf %60, %68 : vector<16x128xf32>
    %70 = arith.addf %69, %1 : vector<16x128xf32>
    %cst_63 = arith.constant 0.707106769 : f32
    %71 = vector.broadcast %cst_63 : f32 to vector<16x128xf32>
    %72 = arith.mulf %70, %71 : vector<16x128xf32>
    %c0_64 = arith.constant 0 : index
    %c0_65 = arith.constant 0 : index
    %c0_66 = arith.constant 0 : index
    %73 = vector.load %arg7[%c0_64, %c0_65, %c0_66] : memref<1x16x128xf32, #tpu.memory_space<vmem>>, vector<1x16x128xf32>
    %74 = vector.shape_cast %73 : vector<1x16x128xf32> to vector<16x128xf32>
    %75 = vector.shape_cast %72 : vector<16x128xf32> to vector<1x16x128xf32>
    tpu.vector_store %arg7[%c0_64, %c0_65, %c0_66], %75 {strides = array<i32>} : memref<1x16x128xf32, #tpu.memory_space<vmem>>, vector<1x16x128xf32>,
    return
  }
  func.func @transform_0(%arg0: i32) -> (i32, i32, i32) {
    %c0_i32 = arith.constant 0 : i32
    %c0_i32_0 = arith.constant 0 : i32
    %c0_i32_1 = arith.constant 0 : i32
    return %arg0, %c0_i32, %c0_i32_0 : i32, i32, i32
  }
  func.func @transform_1(%arg0: i32) -> (i32, i32, i32) {
    %c0_i32 = arith.constant 0 : i32
    %c0_i32_0 = arith.constant 0 : i32
    %c0_i32_1 = arith.constant 0 : i32
    return %arg0, %c0_i32, %c0_i32_0 : i32, i32, i32
  }
  func.func @transform_2(%arg0: i32) -> (i32, i32, i32) {
    %c0_i32 = arith.constant 0 : i32
    %c0_i32_0 = arith.constant 0 : i32
    %c0_i32_1 = arith.constant 0 : i32
    %c0_i32_2 = arith.constant 0 : i32
    return %c0_i32, %c0_i32_0, %c0_i32_1 : i32, i32, i32
  }
  func.func @transform_3(%arg0: i32) -> (i32, i32, i32) {
    %c0_i32 = arith.constant 0 : i32
    %c0_i32_0 = arith.constant 0 : i32
    %c0_i32_1 = arith.constant 0 : i32
    %c0_i32_2 = arith.constant 0 : i32
    return %c0_i32, %c0_i32_0, %c0_i32_1 : i32, i32, i32
  }
  func.func @transform_4(%arg0: i32) -> (i32, i32) {
    %c0_i32 = arith.constant 0 : i32
    %c0_i32_0 = arith.constant 0 : i32
    %c0_i32_1 = arith.constant 0 : i32
    return %c0_i32, %c0_i32_0 : i32, i32
  }
  func.func @transform_5(%arg0: i32) -> (i32, i32) {
    %c0_i32 = arith.constant 0 : i32
    %c0_i32_0 = arith.constant 0 : i32
    %c0_i32_1 = arith.constant 0 : i32
    return %c0_i32, %c0_i32_0 : i32, i32
  }
  func.func @transform_6(%arg0: i32) -> (i32, i32, i32) {
    %c0_i32 = arith.constant 0 : i32
    %c0_i32_0 = arith.constant 0 : i32
    %c0_i32_1 = arith.constant 0 : i32
    return %arg0, %c0_i32, %c0_i32_0 : i32, i32, i32
  }
}

</mosaic_0001>

<llo_original>
// kernel: tpu_custom_call.1
$region0: #{tpu_custom_call.1}
  #allocation0 [shape = 'u32[]', space=smem, size = 0x4, offset = 0x4, fixed_abs, tag = 'smem constant byte address 0x4 - core index']
  #allocation1 [shape = 'u32[72,128]{1,0:T(1,128)}', space=vmem, size = 0x9000, scoped, tag = 'internal scratch']
  #allocation2 [shape = 'f32[16,132]{1,0:T(8,128)}', space=vmem, size = 0x4000, scoped, tag = 'scratch operand']
  %s0 = inlined_call_operand.vmem [shape: f32[2,16,128], index: 0, kind: input, shape index: {}]
  %s1 = inlined_call_operand.vmem [shape: f32[2,16,1], index: 1, kind: input, shape index: {}]
  %s2 = inlined_call_operand.hbm [shape: f32[5,16,16], index: 2, kind: input, shape index: {}]
  %s3 = inlined_call_operand.hbm [shape: f32[5,16,16], index: 3, kind: input, shape index: {}]
  %s4 = inlined_call_operand.vmem [shape: f32[16,1], index: 4, kind: input, shape index: {}]
  %s5 = inlined_call_operand.vmem [shape: f32[16,1], index: 5, kind: input, shape index: {}]
  %s6 = inlined_call_operand.hbm [shape: f32[2,16,128], index: 6, kind: output, shape index: {}]
  %s7 = sld [smem:[#allocation0]]
  $region65: #{tpu_custom_call.1} parent=0
    _
  %s9 = ssub.s32 1, %s7
  %s10 = scalar_select 0, %s9, %s7
  $region1: #{tpu_custom_call.1} parent=0
    #allocation3 [shape = 'u8[40960]{0}', space=vmem, size = 0xa000, scoped, tag = 'input window, operand 2, single buffered']
    #allocation4 [shape = 's32[2]{0}', space=sflag, size = 0x8, scoped, tag = 'scoped memory for tpu_custom_call.1']
    #allocation5 [shape = 's32[2]{0}', space=sflag, size = 0x8, scoped, tag = 'scoped memory for tpu_custom_call.1']
    #allocation6 [shape = 'u8[40960]{0}', space=vmem, size = 0xa000, scoped, tag = 'input window, operand 3, single buffered']
    #allocation7 [shape = 's32[1]{0}', space=sflag, size = 0x4, scoped, tag = 'scoped memory for tpu_custom_call.1']
    #allocation8 [shape = 'u8[16384]{0}', space=vmem, size = 0x4000, scoped, tag = 'output window, operand 0']
    %11 = vsyncpa [#allocation4], 0
    %12 = vsyncpa [#allocation7], 0
    %13 = vsyncpa [#allocation5], 0
    %s14 = scalar_lea.sflag [#allocation5], 1
    %15 = vsyncpa %s14, 0
    loop: start=0, step=1, limit=4
    $region2: #{tpu_custom_call.1} parent=1 // loop_pre_header
      _
    $region3: #{tpu_custom_call.1} parent=1 // loop_header
      %s17 = sphi 0, %s21
      %p18 = scmp.ge.s32.totalorder %s17, 4
      %s27 = sphi 0, %s29
      %s30 = sphi 0, %s27
      %s31 = sphi 0, %s30
      %s47 = sphi 0, %s31
      %s53 = sphi 0, %s55
      %s56 = sphi 0, %s53
      %s57 = sphi 0, %s56
      %s73 = sphi 0, %s57
      %s77 = sphi 0, %s77
      %s79 = sphi 0, %s77
      %s80 = sphi 0, %s79
      %s94 = sphi 0, %s80
      %s98 = sphi 0, %s98
      %s100 = sphi 0, %s98
      %s101 = sphi 0, %s100
      %s115 = sphi 0, %s101
      %s119 = sphi 0, %s119
      %s121 = sphi 0, %s119
      %s122 = sphi 0, %s121
      %s136 = sphi 0, %s122
      %s140 = sphi 0, %s140
      %s142 = sphi 0, %s140
      %s143 = sphi 0, %s142
      %s157 = sphi 0, %s143
      %s163 = sphi 0, %s165
      %s166 = sphi 0, %s163
      %s167 = sphi 0, %s166
      %s183 = sphi 0, %s167
    $region4: #{tpu_custom_call.1} parent=1 // loop_header_branch
      %20 = sbr.rel (%p18) target = $region8
    $region5: #{tpu_custom_call.1} parent=1 // loop_body
      %s22 = ssub.s32 %s17, 1
      %s23 = ssub.s32 %s17, 2
      %s24 = sadd.s32 %s17, 1
      %s25 = ssub.s32 %s17, %s24
      %p26 = scmp.eq.s32.totalorder %s25, 0
      %s28 = sadd.s32 %s27, 1
      %s29 = scalar_select %p26, %s27, %s28
      %p32 = pneg %p26
      %p33 = scmp.eq.s32.totalorder %s17, 1
      %p34 = por %p32, %p33
      %p35 = scmp.ne.s32.totalorder %s27, %s30
      %p36 = scmp.eq.s32.totalorder %s17, 0
      %p37 = por %p35, %p36
      %p38 = scmp.ne.s32.totalorder %s27, %s30
      %p39 = scmp.eq.s32.totalorder %s22, 1
      %p40 = por %p38, %p39
      %p41 = scmp.ne.s32.totalorder %s30, %s31
      %p42 = scmp.eq.s32.totalorder %s22, 0
      %p43 = por %p41, %p42
      %p44 = scmp.ne.s32.totalorder %s30, %s31
      %p45 = scmp.eq.s32.totalorder %s23, 1
      %p46 = por %p44, %p45
      %p48 = scmp.ne.s32.totalorder %s31, %s47
      %p49 = scmp.eq.s32.totalorder %s23, 0
      %p50 = por %p48, %p49
      %s51 = ssub.s32 %s17, %s24
      %p52 = scmp.eq.s32.totalorder %s51, 0
      %s54 = sadd.s32 %s53, 1
      %s55 = scalar_select %p52, %s53, %s54
      %p58 = pneg %p52
      %p59 = scmp.eq.s32.totalorder %s17, 1
      %p60 = por %p58, %p59
      %p61 = scmp.ne.s32.totalorder %s53, %s56
      %p62 = scmp.eq.s32.totalorder %s17, 0
      %p63 = por %p61, %p62
      %p64 = scmp.ne.s32.totalorder %s53, %s56
      %p65 = scmp.eq.s32.totalorder %s22, 1
      %p66 = por %p64, %p65
      %p67 = scmp.ne.s32.totalorder %s56, %s57
      %p68 = scmp.eq.s32.totalorder %s22, 0
      %p69 = por %p67, %p68
      %p70 = scmp.ne.s32.totalorder %s56, %s57
      %p71 = scmp.eq.s32.totalorder %s23, 1
      %p72 = por %p70, %p71
      %p74 = scmp.ne.s32.totalorder %s57, %s73
      %p75 = scmp.eq.s32.totalorder %s23, 0
      %p76 = por %p74, %p75
      %s78 = sadd.s32 %s77, 1
      %p81 = scmp.eq.s32.totalorder %s17, 1
      %p82 = scmp.ne.s32.totalorder %s77, %s79
      %p83 = scmp.eq.s32.totalorder %s17, 0
      %p84 = por %p82, %p83
      %p85 = scmp.ne.s32.totalorder %s77, %s79
      %p86 = scmp.eq.s32.totalorder %s22, 1
      %p87 = por %p85, %p86
      %p88 = scmp.ne.s32.totalorder %s79, %s80
      %p89 = scmp.eq.s32.totalorder %s22, 0
      %p90 = por %p88, %p89
      %p91 = scmp.ne.s32.totalorder %s79, %s80
      %p92 = scmp.eq.s32.totalorder %s23, 1
      %p93 = por %p91, %p92
      %p95 = scmp.ne.s32.totalorder %s80, %s94
      %p96 = scmp.eq.s32.totalorder %s23, 0
      %p97 = por %p95, %p96
      %s99 = sadd.s32 %s98, 1
      %p102 = scmp.eq.s32.totalorder %s17, 1
      %p103 = scmp.ne.s32.totalorder %s98, %s100
      %p104 = scmp.eq.s32.totalorder %s17, 0
      %p105 = por %p103, %p104
      %p106 = scmp.ne.s32.totalorder %s98, %s100
      %p107 = scmp.eq.s32.totalorder %s22, 1
      %p108 = por %p106, %p107
      %p109 = scmp.ne.s32.totalorder %s100, %s101
      %p110 = scmp.eq.s32.totalorder %s22, 0
      %p111 = por %p109, %p110
      %p112 = scmp.ne.s32.totalorder %s100, %s101
      %p113 = scmp.eq.s32.totalorder %s23, 1
      %p114 = por %p112, %p113
      %p116 = scmp.ne.s32.totalorder %s101, %s115
      %p117 = scmp.eq.s32.totalorder %s23, 0
      %p118 = por %p116, %p117
      %s120 = sadd.s32 %s119, 1
      %p123 = scmp.eq.s32.totalorder %s17, 1
      %p124 = scmp.ne.s32.totalorder %s119, %s121
      %p125 = scmp.eq.s32.totalorder %s17, 0
      %p126 = por %p124, %p125
      %p127 = scmp.ne.s32.totalorder %s119, %s121
      %p128 = scmp.eq.s32.totalorder %s22, 1
      %p129 = por %p127, %p128
      %p130 = scmp.ne.s32.totalorder %s121, %s122
      %p131 = scmp.eq.s32.totalorder %s22, 0
      %p132 = por %p130, %p131
      %p133 = scmp.ne.s32.totalorder %s121, %s122
      %p134 = scmp.eq.s32.totalorder %s23, 1
      %p135 = por %p133, %p134
      %p137 = scmp.ne.s32.totalorder %s122, %s136
      %p138 = scmp.eq.s32.totalorder %s23, 0
      %p139 = por %p137, %p138
      %s141 = sadd.s32 %s140, 1
      %p144 = scmp.eq.s32.totalorder %s17, 1
      %p145 = scmp.ne.s32.totalorder %s140, %s142
      %p146 = scmp.eq.s32.totalorder %s17, 0
      %p147 = por %p145, %p146
      %p148 = scmp.ne.s32.totalorder %s140, %s142
      %p149 = scmp.eq.s32.totalorder %s22, 1
      %p150 = por %p148, %p149
      %p151 = scmp.ne.s32.totalorder %s142, %s143
      %p152 = scmp.eq.s32.totalorder %s22, 0
      %p153 = por %p151, %p152
      %p154 = scmp.ne.s32.totalorder %s142, %s143
      %p155 = scmp.eq.s32.totalorder %s23, 1
      %p156 = por %p154, %p155
      %p158 = scmp.ne.s32.totalorder %s143, %s157
      %p159 = scmp.eq.s32.totalorder %s23, 0
      %p160 = por %p158, %p159
      %s161 = ssub.s32 %s17, %s24
      %p162 = scmp.eq.s32.totalorder %s161, 0
      %s164 = sadd.s32 %s163, 1
      %s165 = scalar_select %p162, %s163, %s164
      %p168 = pneg %p162
      %p169 = scmp.eq.s32.totalorder %s17, 1
      %p170 = por %p168, %p169
      %p171 = scmp.ne.s32.totalorder %s163, %s166
      %p172 = scmp.eq.s32.totalorder %s17, 0
      %p173 = por %p171, %p172
      %p174 = scmp.ne.s32.totalorder %s163, %s166
      %p175 = scmp.eq.s32.totalorder %s22, 1
      %p176 = por %p174, %p175
      %p177 = scmp.ne.s32.totalorder %s166, %s167
      %p178 = scmp.eq.s32.totalorder %s22, 0
      %p179 = por %p177, %p178
      %p180 = scmp.ne.s32.totalorder %s166, %s167
      %p181 = scmp.eq.s32.totalorder %s23, 1
      %p182 = por %p180, %p181
      %p184 = scmp.ne.s32.totalorder %s167, %s183
      %p185 = scmp.eq.s32.totalorder %s23, 0
      %p186 = por %p184, %p185
      %p187 = scmp.le.s32.totalorder 1, %s17
      %p188 = scmp.lt.s32.totalorder %s17, 3
      %p189 = pnand %p187, %p188
      %p190 = pneg %p189
      // Predicated region
      $region9: #{tpu_custom_call.1} parent=5 // pred_check
        _
      $region10: #{tpu_custom_call.1} parent=5 // pred_check_branch
        %192 = sbr.rel (%p189) target = $region12
      $region11: #{tpu_custom_call.1} parent=5 // pred_region
        %s193 = ssub.s32 %s17, 1
        // Predicated region
        $region13: #{tpu_custom_call.1} parent=11 // pred_check
          %p194 = pneg %p90
        $region14: #{tpu_custom_call.1} parent=11 // pred_check_branch
          %196 = sbr.rel (%p194) target = $region16
        $region15: #{tpu_custom_call.1} parent=11 // pred_region
          %198 = vsyncadd [#allocation4], 0
          %s199 = sshll.u32 %s2, 4
          %s200 = int_to_ptr.hbm [resolvable:$true] %s199
          %s201 = sshll.u32 [#allocation3], 4
          %s202 = int_to_ptr.vmem [resolvable:$true] %s201
          %207 = dma.hbm_to_vmem [thread:$0]  %s200, 1280, %s202, [#allocation4], 128, 128, 8
        $region16: #{tpu_custom_call.1} parent=11 // pred_fallthru
          _
        // Predicated region
        $region17: #{tpu_custom_call.1} parent=11 // pred_check
          %p208 = pneg %p111
        $region18: #{tpu_custom_call.1} parent=11 // pred_check_branch
          %210 = sbr.rel (%p208) target = $region20
        $region19: #{tpu_custom_call.1} parent=11 // pred_region
          %212 = vsyncadd [#allocation7], 0
          %s213 = sshll.u32 %s3, 4
          %s214 = int_to_ptr.hbm [resolvable:$true] %s213
          %s215 = sshll.u32 [#allocation6], 4
          %s216 = int_to_ptr.vmem [resolvable:$true] %s215
          %221 = dma.hbm_to_vmem [thread:$0]  %s214, 1280, %s216, [#allocation7], 128, 128, 8
        $region20: #{tpu_custom_call.1} parent=11 // pred_fallthru
          _
        // Predicated region
        $region21: #{tpu_custom_call.1} parent=11 // pred_check
          %p222 = pneg %p132
        $region22: #{tpu_custom_call.1} parent=11 // pred_check_branch
          %224 = sbr.rel (%p222) target = $region24
        $region23: #{tpu_custom_call.1} parent=11 // pred_region
          _
        $region24: #{tpu_custom_call.1} parent=11 // pred_fallthru
          _
        // Predicated region
        $region25: #{tpu_custom_call.1} parent=11 // pred_check
          %p225 = pneg %p153
        $region26: #{tpu_custom_call.1} parent=11 // pred_check_branch
          %227 = sbr.rel (%p225) target = $region28
        $region27: #{tpu_custom_call.1} parent=11 // pred_region
          _
        $region28: #{tpu_custom_call.1} parent=11 // pred_fallthru
          _
      $region12: #{tpu_custom_call.1} parent=5 // pred_fallthru
        _
      %p228 = scmp.lt.s32.totalorder %s17, 2
      // Predicated region
      $region29: #{tpu_custom_call.1} parent=5 // pred_check
        %p229 = pneg %p228
      $region30: #{tpu_custom_call.1} parent=5 // pred_check_branch
        %231 = sbr.rel (%p229) target = $region32
      $region31: #{tpu_custom_call.1} parent=5 // pred_region
        // Predicated region
        $region33: #{tpu_custom_call.1} parent=31 // pred_check
          %p232 = pneg %p37
        $region34: #{tpu_custom_call.1} parent=31 // pred_check_branch
          %234 = sbr.rel (%p232) target = $region36
        $region35: #{tpu_custom_call.1} parent=31 // pred_region
          %p235 = scmp.lt.s32.totalorder %s17, 1
          %s236 = scalar_select %p235, %s17, 1
          %s237 = smul.addr %s236, 2
          %s238 = smul.addr %s237, 8
          %s239 = scalar_lea.vmem %s0, %s238
        $region36: #{tpu_custom_call.1} parent=31 // pred_fallthru
          _
        // Predicated region
        $region37: #{tpu_custom_call.1} parent=31 // pred_check
          %p240 = pneg %p63
        $region38: #{tpu_custom_call.1} parent=31 // pred_check_branch
          %242 = sbr.rel (%p240) target = $region40
        $region39: #{tpu_custom_call.1} parent=31 // pred_region
          %p243 = scmp.lt.s32.totalorder %s17, 1
          %s244 = scalar_select %p243, %s17, 1
          %s245 = smul.addr %s244, 2
          %s246 = smul.addr %s245, 8
          %s247 = scalar_lea.vmem %s1, %s246
        $region40: #{tpu_custom_call.1} parent=31 // pred_fallthru
          _
      $region32: #{tpu_custom_call.1} parent=5 // pred_fallthru
        _
      %p248 = scmp.le.s32.totalorder 1, %s17
      %p249 = scmp.lt.s32.totalorder %s17, 3
      %p250 = pnand %p248, %p249
      %p251 = pneg %p250
      // Predicated region
      $region41: #{tpu_custom_call.1} parent=5 // pred_check
        _
      $region42: #{tpu_custom_call.1} parent=5 // pred_check_branch
        %253 = sbr.rel (%p250) target = $region44
      $region43: #{tpu_custom_call.1} parent=5 // pred_region
        %s254 = ssub.s32 %s17, 1
        // Predicated region
        $region45: #{tpu_custom_call.1} parent=43 // pred_check
          %p255 = pneg %p90
        $region46: #{tpu_custom_call.1} parent=43 // pred_check_branch
          %257 = sbr.rel (%p255) target = $region48
        $region47: #{tpu_custom_call.1} parent=43 // pred_region
          %259 = dma.done [#allocation4], 1280
        $region48: #{tpu_custom_call.1} parent=43 // pred_fallthru
          _
        // Predicated region
        $region49: #{tpu_custom_call.1} parent=43 // pred_check
          %p260 = pneg %p111
        $region50: #{tpu_custom_call.1} parent=43 // pred_check_branch
          %262 = sbr.rel (%p260) target = $region52
        $region51: #{tpu_custom_call.1} parent=43 // pred_region
          %264 = dma.done [#allocation7], 1280
        $region52: #{tpu_custom_call.1} parent=43 // pred_fallthru
          _
        %p265 = scmp.lt.s32.totalorder %s22, 1
        %s266 = scalar_select %p265, %s22, 1
        %s267 = smul.addr %s266, 2
        %s268 = smul.addr %s267, 8
        %s269 = scalar_lea.vmem %s0, %s268
        %p270 = pneg %p43
        %p271 = pneg %p40
        %p272 = scmp.lt.s32.totalorder %s22, 1
        %s273 = scalar_select %p272, %s22, 1
        %s274 = smul.addr %s273, 2
        %s275 = smul.addr %s274, 8
        %s276 = scalar_lea.vmem %s1, %s275
        %p277 = pneg %p69
        %p278 = pneg %p66
        %p279 = pneg %p90
        %p280 = pneg %p87
        %p281 = pneg %p111
        %p282 = pneg %p108
        %p283 = pneg %p132
        %p284 = pneg %p129
        %p285 = pneg %p153
        %p286 = pneg %p150
        %p287 = pneg %p179
        %p288 = pneg %p176
        %s289 = sand.u32 %s166, 1
        %s290 = scalar_lea.sflag [#allocation5], %s289
        %s291 = sand.u32 %s166, 1
        %s292 = smul.addr %s291, 16
        %s293 = scalar_lea.vmem [#allocation8], %s292
        %p294 = scmp.lt.s32.totalorder %s22, 1
        %s295 = scalar_select %p294, %s22, 1
        %s296 = smul.addr %s295, 2
        %s297 = smul.addr %s296, 8
        %s298 = scalar_lea.vmem %s0, %s297
        %p299 = scmp.lt.s32.totalorder %s22, 1
        %s300 = scalar_select %p299, %s22, 1
        %s301 = smul.addr %s300, 2
        %s302 = smul.addr %s301, 8
        %s303 = scalar_lea.vmem %s1, %s302
        %v304 = vld [vmem:[%s298] sm:$0xff]
        %v305 = vld [vmem:[%s298 + $0x8] sm:$0xff]
        %vm306 = vcmask 15360
        %307 = vst.msk [vmem:[#allocation2] sm:$0xff] %vm306, 0.0
        %308 = vst.msk [vmem:[#allocation2 + $0x10] sm:$0xff] %vm306, 0.0
        %vm309 = vcmask 31760
        %310 = vst.msk [vmem:[#allocation2 + $0x8] sm:$0xff] %vm309, 0.0
        %311 = vst.msk [vmem:[#allocation2 + $0x18] sm:$0xff] %vm309, 0.0
        %314 = vrot.lane.b32.xlu0 %v304, 2
        %v315 = vpop.permute.xlu0 %314
        %316 = vrot.lane.b32.xlu0 %v305, 2
        %v317 = vpop.permute.xlu0 %316
        %vm320 = vcmask 1047568
        %321 = vst.msk [vmem:[#allocation2] sm:$0xff] %vm320, %v315
        %322 = vst.msk [vmem:[#allocation2 + $0x8] sm:$0xff] %vm306, %v315
        %323 = vst.msk [vmem:[#allocation2 + $0x10] sm:$0xff] %vm320, %v317
        %324 = vst.msk [vmem:[#allocation2 + $0x18] sm:$0xff] %vm306, %v317
        %v325 = vld [vmem:[#allocation2] sm:$0xff]
        %v326 = vld [vmem:[#allocation2 + $0x10] sm:$0xff]
        %v327 = vld [vmem:[#allocation3] sm:$0xff]
        %v328 = vld [vmem:[#allocation3 + $0x8] sm:$0xff]
        %v329 = vld [vmem:[#allocation6] sm:$0xff]
        %v330 = vld [vmem:[#allocation6 + $0x8] sm:$0xff]
        %v331 = vld [vmem:[#allocation2 + $0x8] sm:$0xff]
        %v332 = vld [vmem:[#allocation2 + $0x18] sm:$0xff]
        %s333 = scalar_lea.vmem [#allocation3], 16
        %v334 = vld [vmem:[%s333] sm:$0xff]
        %v335 = vld [vmem:[%s333 + $0x8] sm:$0xff]
        %340 = vrot.lane.b32.xlu0 %v325, 127
        %v341 = vpop.permute.xlu0 %340
        %342 = vrot.lane.b32.xlu0 %v331, 127
        %v343 = vpop.permute.xlu0 %342
        %344 = vrot.lane.b32.xlu0 %v326, 127
        %v345 = vpop.permute.xlu0 %344
        %346 = vrot.lane.b32.xlu0 %v332, 127
        %v347 = vpop.permute.xlu0 %346
        %vm348 = vcmask 1039360
        %v349 = vsel %vm348, %v341, %v343
        %v350 = vsel %vm348, %v345, %v347
        %vm353 = vcmask 130048
        %v355 = vsel %vm353, %v334, 0
        %v358 = vsel %vm353, %v335, 0
        %360 = vmatpush.msra.mxu0 0.0
        %361 = vmatpush.msra.mxu0 0.0
        %362 = vmatpush.msra.mxu0 0.0
        %363 = vmatpush.msra.mxu0 0.0
        %364 = vmatpush.msra.mxu0 0.0
        %365 = vmatpush.msra.mxu0 0.0
        %366 = vmatpush.msra.mxu0 0.0
        %367 = vmatpush.msra.mxu0 0.0
        %368 = vmatpush.msra.mxu0 0.0
        %369 = vmatpush.msra.mxu0 0.0
        %370 = vmatpush.msra.mxu0 0.0
        %371 = vmatpush.msra.mxu0 0.0
        %372 = vmatpush.msra.mxu0 0.0
        %373 = vmatpush.msra.mxu0 0.0
        %374 = vmatpush.msra.mxu0 %v350
        %375 = vmatpush.msra.mxu0 %v349
        %376 = vmatmul.f32.gmra.mxu0 %v355
        %v377 = vpop.f32.mrf.mxu0
        %v378 = vadd.f32 0.0, %v377
        %379 = vmatmul.f32.gmra.mxu0 %v358
        %v380 = vpop.f32.mrf.mxu0
        %v381 = vadd.f32 0.0, %v380
        %382 = vdwg.mxu0
        %v384 = vsel %vm353, %v327, 0
        %v387 = vsel %vm353, %v328, 0
        %389 = vmatpush.msra.mxu0 0.0
        %390 = vmatpush.msra.mxu0 0.0
        %391 = vmatpush.msra.mxu0 0.0
        %392 = vmatpush.msra.mxu0 0.0
        %393 = vmatpush.msra.mxu0 0.0
        %394 = vmatpush.msra.mxu0 0.0
        %395 = vmatpush.msra.mxu0 0.0
        %396 = vmatpush.msra.mxu0 0.0
        %397 = vmatpush.msra.mxu0 0.0
        %398 = vmatpush.msra.mxu0 0.0
        %399 = vmatpush.msra.mxu0 0.0
        %400 = vmatpush.msra.mxu0 0.0
        %401 = vmatpush.msra.mxu0 0.0
        %402 = vmatpush.msra.mxu0 0.0
        %403 = vmatpush.msra.mxu0 %v326
        %404 = vmatpush.msra.mxu0 %v325
        %405 = vmatmul.f32.gmra.mxu0 %v384
        %v406 = vpop.f32.mrf.mxu0
        %v407 = vadd.f32 %v378, %v406
        %408 = vmatmul.f32.gmra.mxu0 %v387
        %v409 = vpop.f32.mrf.mxu0
        %v410 = vadd.f32 %v381, %v409
        %411 = vdwg.mxu0
        %s412 = scalar_lea.vmem [#allocation6], 16
        %v413 = vld [vmem:[%s412] sm:$0xff]
        %v414 = vld [vmem:[%s412 + $0x8] sm:$0xff]
        %v416 = vsel %vm353, %v413, 0
        %v419 = vsel %vm353, %v414, 0
        %421 = vmatpush.msra.mxu0 0.0
        %422 = vmatpush.msra.mxu0 0.0
        %423 = vmatpush.msra.mxu0 0.0
        %424 = vmatpush.msra.mxu0 0.0
        %425 = vmatpush.msra.mxu0 0.0
        %426 = vmatpush.msra.mxu0 0.0
        %427 = vmatpush.msra.mxu0 0.0
        %428 = vmatpush.msra.mxu0 0.0
        %429 = vmatpush.msra.mxu0 0.0
        %430 = vmatpush.msra.mxu0 0.0
        %431 = vmatpush.msra.mxu0 0.0
        %432 = vmatpush.msra.mxu0 0.0
        %433 = vmatpush.msra.mxu0 0.0
        %434 = vmatpush.msra.mxu0 0.0
        %435 = vmatpush.msra.mxu0 %v350
        %436 = vmatpush.msra.mxu0 %v349
        %437 = vmatmul.f32.gmra.mxu0 %v416
        %v438 = vpop.f32.mrf.mxu0
        %v439 = vadd.f32 0.0, %v438
        %440 = vmatmul.f32.gmra.mxu0 %v419
        %v441 = vpop.f32.mrf.mxu0
        %v442 = vadd.f32 0.0, %v441
        %443 = vdwg.mxu0
        %v445 = vsel %vm353, %v329, 0
        %v448 = vsel %vm353, %v330, 0
        %450 = vmatpush.msra.mxu0 0.0
        %451 = vmatpush.msra.mxu0 0.0
        %452 = vmatpush.msra.mxu0 0.0
        %453 = vmatpush.msra.mxu0 0.0
        %454 = vmatpush.msra.mxu0 0.0
        %455 = vmatpush.msra.mxu0 0.0
        %456 = vmatpush.msra.mxu0 0.0
        %457 = vmatpush.msra.mxu0 0.0
        %458 = vmatpush.msra.mxu0 0.0
        %459 = vmatpush.msra.mxu0 0.0
        %460 = vmatpush.msra.mxu0 0.0
        %461 = vmatpush.msra.mxu0 0.0
        %462 = vmatpush.msra.mxu0 0.0
        %463 = vmatpush.msra.mxu0 0.0
        %464 = vmatpush.msra.mxu0 %v326
        %465 = vmatpush.msra.mxu0 %v325
        %466 = vmatmul.f32.gmra.mxu0 %v445
        %v467 = vpop.f32.mrf.mxu0
        %v468 = vadd.f32 %v439, %v467
        %469 = vmatmul.f32.gmra.mxu0 %v448
        %v470 = vpop.f32.mrf.mxu0
        %v471 = vadd.f32 %v442, %v470
        %472 = vdwg.mxu0
        %s473 = scalar_lea.vmem [#allocation3], 32
        %v474 = vld [vmem:[%s473] sm:$0xff]
        %v475 = vld [vmem:[%s473 + $0x8] sm:$0xff]
        %476 = vrot.lane.b32.xlu0 %v325, 126
        %v477 = vpop.permute.xlu0 %476
        %478 = vrot.lane.b32.xlu0 %v331, 126
        %v479 = vpop.permute.xlu0 %478
        %480 = vrot.lane.b32.xlu0 %v326, 126
        %v481 = vpop.permute.xlu0 %480
        %482 = vrot.lane.b32.xlu0 %v332, 126
        %v483 = vpop.permute.xlu0 %482
        %vm484 = vcmask 1031168
        %v485 = vsel %vm484, %v477, %v479
        %v486 = vsel %vm484, %v481, %v483
        %v490 = vsel %vm353, %v474, 0
        %v493 = vsel %vm353, %v475, 0
        %495 = vmatpush.msra.mxu0 0.0
        %496 = vmatpush.msra.mxu0 0.0
        %497 = vmatpush.msra.mxu0 0.0
        %498 = vmatpush.msra.mxu0 0.0
        %499 = vmatpush.msra.mxu0 0.0
        %500 = vmatpush.msra.mxu0 0.0
        %501 = vmatpush.msra.mxu0 0.0
        %502 = vmatpush.msra.mxu0 0.0
        %503 = vmatpush.msra.mxu0 0.0
        %504 = vmatpush.msra.mxu0 0.0
        %505 = vmatpush.msra.mxu0 0.0
        %506 = vmatpush.msra.mxu0 0.0
        %507 = vmatpush.msra.mxu0 0.0
        %508 = vmatpush.msra.mxu0 0.0
        %509 = vmatpush.msra.mxu0 %v486
        %510 = vmatpush.msra.mxu0 %v485
        %511 = vmatmul.f32.gmra.mxu0 %v490
        %v512 = vpop.f32.mrf.mxu0
        %v513 = vadd.f32 0.0, %v512
        %514 = vmatmul.f32.gmra.mxu0 %v493
        %v515 = vpop.f32.mrf.mxu0
        %v516 = vadd.f32 0.0, %v515
        %517 = vdwg.mxu0
        %v518 = vadd.f32 %v407, %v513
        %v519 = vadd.f32 %v410, %v516
        %s520 = scalar_lea.vmem [#allocation6], 32
        %v521 = vld [vmem:[%s520] sm:$0xff]
        %v522 = vld [vmem:[%s520 + $0x8] sm:$0xff]
        %v524 = vsel %vm353, %v521, 0
        %v527 = vsel %vm353, %v522, 0
        %529 = vmatpush.msra.mxu0 0.0
        %530 = vmatpush.msra.mxu0 0.0
        %531 = vmatpush.msra.mxu0 0.0
        %532 = vmatpush.msra.mxu0 0.0
        %533 = vmatpush.msra.mxu0 0.0
        %534 = vmatpush.msra.mxu0 0.0
        %535 = vmatpush.msra.mxu0 0.0
        %536 = vmatpush.msra.mxu0 0.0
        %537 = vmatpush.msra.mxu0 0.0
        %538 = vmatpush.msra.mxu0 0.0
        %539 = vmatpush.msra.mxu0 0.0
        %540 = vmatpush.msra.mxu0 0.0
        %541 = vmatpush.msra.mxu0 0.0
        %542 = vmatpush.msra.mxu0 0.0
        %543 = vmatpush.msra.mxu0 %v486
        %544 = vmatpush.msra.mxu0 %v485
        %545 = vmatmul.f32.gmra.mxu0 %v524
        %v546 = vpop.f32.mrf.mxu0
        %v547 = vadd.f32 0.0, %v546
        %548 = vmatmul.f32.gmra.mxu0 %v527
        %v549 = vpop.f32.mrf.mxu0
        %v550 = vadd.f32 0.0, %v549
        %551 = vdwg.mxu0
        %v552 = vadd.f32 %v468, %v547
        %v553 = vadd.f32 %v471, %v550
        %s554 = scalar_lea.vmem [#allocation3], 48
        %v555 = vld [vmem:[%s554] sm:$0xff]
        %v556 = vld [vmem:[%s554 + $0x8] sm:$0xff]
        %557 = vrot.lane.b32.xlu0 %v325, 125
        %v558 = vpop.permute.xlu0 %557
        %559 = vrot.lane.b32.xlu0 %v331, 125
        %v560 = vpop.permute.xlu0 %559
        %561 = vrot.lane.b32.xlu0 %v326, 125
        %v562 = vpop.permute.xlu0 %561
        %563 = vrot.lane.b32.xlu0 %v332, 125
        %v564 = vpop.permute.xlu0 %563
        %vm565 = vcmask 1022976
        %v566 = vsel %vm565, %v558, %v560
        %v567 = vsel %vm565, %v562, %v564
        %v571 = vsel %vm353, %v555, 0
        %v574 = vsel %vm353, %v556, 0
        %576 = vmatpush.msra.mxu0 0.0
        %577 = vmatpush.msra.mxu0 0.0
        %578 = vmatpush.msra.mxu0 0.0
        %579 = vmatpush.msra.mxu0 0.0
        %580 = vmatpush.msra.mxu0 0.0
        %581 = vmatpush.msra.mxu0 0.0
        %582 = vmatpush.msra.mxu0 0.0
        %583 = vmatpush.msra.mxu0 0.0
        %584 = vmatpush.msra.mxu0 0.0
        %585 = vmatpush.msra.mxu0 0.0
        %586 = vmatpush.msra.mxu0 0.0
        %587 = vmatpush.msra.mxu0 0.0
        %588 = vmatpush.msra.mxu0 0.0
        %589 = vmatpush.msra.mxu0 0.0
        %590 = vmatpush.msra.mxu0 %v567
        %591 = vmatpush.msra.mxu0 %v566
        %592 = vmatmul.f32.gmra.mxu0 %v571
        %v593 = vpop.f32.mrf.mxu0
        %v594 = vadd.f32 0.0, %v593
        %595 = vmatmul.f32.gmra.mxu0 %v574
        %v596 = vpop.f32.mrf.mxu0
        %v597 = vadd.f32 0.0, %v596
        %598 = vdwg.mxu0
        %v599 = vadd.f32 %v518, %v594
        %v600 = vadd.f32 %v519, %v597
        %s601 = scalar_lea.vmem [#allocation6], 48
        %v602 = vld [vmem:[%s601] sm:$0xff]
        %v603 = vld [vmem:[%s601 + $0x8] sm:$0xff]
        %v605 = vsel %vm353, %v602, 0
        %v608 = vsel %vm353, %v603, 0
        %610 = vmatpush.msra.mxu0 0.0
        %611 = vmatpush.msra.mxu0 0.0
        %612 = vmatpush.msra.mxu0 0.0
        %613 = vmatpush.msra.mxu0 0.0
        %614 = vmatpush.msra.mxu0 0.0
        %615 = vmatpush.msra.mxu0 0.0
        %616 = vmatpush.msra.mxu0 0.0
        %617 = vmatpush.msra.mxu0 0.0
        %618 = vmatpush.msra.mxu0 0.0
        %619 = vmatpush.msra.mxu0 0.0
        %620 = vmatpush.msra.mxu0 0.0
        %621 = vmatpush.msra.mxu0 0.0
        %622 = vmatpush.msra.mxu0 0.0
        %623 = vmatpush.msra.mxu0 0.0
        %624 = vmatpush.msra.mxu0 %v567
        %625 = vmatpush.msra.mxu0 %v566
        %626 = vmatmul.f32.gmra.mxu0 %v605
        %v627 = vpop.f32.mrf.mxu0
        %v628 = vadd.f32 0.0, %v627
        %629 = vmatmul.f32.gmra.mxu0 %v608
        %v630 = vpop.f32.mrf.mxu0
        %v631 = vadd.f32 0.0, %v630
        %632 = vdwg.mxu0
        %v633 = vadd.f32 %v552, %v628
        %v634 = vadd.f32 %v553, %v631
        %s635 = scalar_lea.vmem [#allocation3], 64
        %v636 = vld [vmem:[%s635] sm:$0xff]
        %v637 = vld [vmem:[%s635 + $0x8] sm:$0xff]
        %638 = vrot.lane.b32.xlu0 %v325, 124
        %v639 = vpop.permute.xlu0 %638
        %640 = vrot.lane.b32.xlu0 %v331, 124
        %v641 = vpop.permute.xlu0 %640
        %642 = vrot.lane.b32.xlu0 %v326, 124
        %v643 = vpop.permute.xlu0 %642
        %644 = vrot.lane.b32.xlu0 %v332, 124
        %v645 = vpop.permute.xlu0 %644
        %vm646 = vcmask 1014784
        %v647 = vsel %vm646, %v639, %v641
        %v648 = vsel %vm646, %v643, %v645
        %v652 = vsel %vm353, %v636, 0
        %v655 = vsel %vm353, %v637, 0
        %657 = vmatpush.msra.mxu0 0.0
        %658 = vmatpush.msra.mxu0 0.0
        %659 = vmatpush.msra.mxu0 0.0
        %660 = vmatpush.msra.mxu0 0.0
        %661 = vmatpush.msra.mxu0 0.0
        %662 = vmatpush.msra.mxu0 0.0
        %663 = vmatpush.msra.mxu0 0.0
        %664 = vmatpush.msra.mxu0 0.0
        %665 = vmatpush.msra.mxu0 0.0
        %666 = vmatpush.msra.mxu0 0.0
        %667 = vmatpush.msra.mxu0 0.0
        %668 = vmatpush.msra.mxu0 0.0
        %669 = vmatpush.msra.mxu0 0.0
        %670 = vmatpush.msra.mxu0 0.0
        %671 = vmatpush.msra.mxu0 %v648
        %672 = vmatpush.msra.mxu0 %v647
        %673 = vmatmul.f32.gmra.mxu0 %v652
        %v674 = vpop.f32.mrf.mxu0
        %v675 = vadd.f32 0.0, %v674
        %676 = vmatmul.f32.gmra.mxu0 %v655
        %v677 = vpop.f32.mrf.mxu0
        %v678 = vadd.f32 0.0, %v677
        %679 = vdwg.mxu0
        %v680 = vadd.f32 %v599, %v675
        %v681 = vadd.f32 %v600, %v678
        %s682 = scalar_lea.vmem [#allocation6], 64
        %v683 = vld [vmem:[%s682] sm:$0xff]
        %v684 = vld [vmem:[%s682 + $0x8] sm:$0xff]
        %v686 = vsel %vm353, %v683, 0
        %v689 = vsel %vm353, %v684, 0
        %691 = vmatpush.msra.mxu0 0.0
        %692 = vmatpush.msra.mxu0 0.0
        %693 = vmatpush.msra.mxu0 0.0
        %694 = vmatpush.msra.mxu0 0.0
        %695 = vmatpush.msra.mxu0 0.0
        %696 = vmatpush.msra.mxu0 0.0
        %697 = vmatpush.msra.mxu0 0.0
        %698 = vmatpush.msra.mxu0 0.0
        %699 = vmatpush.msra.mxu0 0.0
        %700 = vmatpush.msra.mxu0 0.0
        %701 = vmatpush.msra.mxu0 0.0
        %702 = vmatpush.msra.mxu0 0.0
        %703 = vmatpush.msra.mxu0 0.0
        %704 = vmatpush.msra.mxu0 0.0
        %705 = vmatpush.msra.mxu0 %v648
        %706 = vmatpush.msra.mxu0 %v647
        %707 = vmatmul.f32.gmra.mxu0 %v686
        %v708 = vpop.f32.mrf.mxu0
        %v709 = vadd.f32 0.0, %v708
        %710 = vmatmul.f32.gmra.mxu0 %v689
        %v711 = vpop.f32.mrf.mxu0
        %v712 = vadd.f32 0.0, %v711
        %713 = vdwg.mxu0
        %v714 = vadd.f32 %v633, %v709
        %v715 = vadd.f32 %v634, %v712
        %v716 = vld [vmem:[%s4] sm:$0xff]
        %v717 = vld [vmem:[%s4 + $0x8] sm:$0xff]
        %719 = vset.pattern.permute.xlu0 0
        %720 = vperm.xlu0 %719, %v716
        %v721 = vpop.permute.xlu0 %720
        %724 = vset.pattern.permute.xlu0 0
        %725 = vperm.xlu0 %724, %v717
        %v726 = vpop.permute.xlu0 %725
        %v728 = vadd.f32 %v680, %v721
        %v729 = vadd.f32 %v681, %v726
        %v730 = vtanh.pop %v728
        %v731 = vtanh.pop %v729
        %v732 = vld [vmem:[%s303] sm:$0xff]
        %v733 = vld [vmem:[%s303 + $0x8] sm:$0xff]
        %735 = vset.pattern.permute.xlu0 0
        %736 = vperm.xlu0 %735, %v732
        %v737 = vpop.permute.xlu0 %736
        %740 = vset.pattern.permute.xlu0 0
        %741 = vperm.xlu0 %740, %v733
        %v742 = vpop.permute.xlu0 %741
        %v744 = vadd.f32 %v730, %v737
        %v745 = vadd.f32 %v731, %v742
        %v746 = vld [vmem:[%s5] sm:$0xff]
        %v747 = vld [vmem:[%s5 + $0x8] sm:$0xff]
        %749 = vset.pattern.permute.xlu0 0
        %750 = vperm.xlu0 %749, %v746
        %v751 = vpop.permute.xlu0 %750
        %754 = vset.pattern.permute.xlu0 0
        %755 = vperm.xlu0 %754, %v747
        %v756 = vpop.permute.xlu0 %755
        %v758 = vadd.f32 %v714, %v751
        %v759 = vadd.f32 %v715, %v756
        %v760 = vxor.u32 %v758, 2147483648
        %v761 = vxor.u32 %v759, 2147483648
        %v762 = vmul.f32 %v760, 1.442695
        %v763 = vpow.pop %v762
        %v764 = vmul.f32 %v761, 1.442695
        %v765 = vpow.pop %v764
        %v766 = vadd.f32 %v763, 1.0
        %v767 = vadd.f32 %v765, 1.0
        %v768 = vrcp.pop %v766
        %v769 = vmul.f32 %v766, %v768
        %v770 = vsub.f32 1.0, %v769
        %v771 = vmul.f32 %v768, %v770
        %v772 = vadd.f32 %v768, %v771
        %vm773 = vweird.f32 %v766
        %vm774 = vweird.f32 %v768
        %vm775 = vmor %vm773, %vm774
        %v776 = vsel %vm775, %v768, %v772
        %v777 = vand.u32 2147483647, %v766
        %vm778 = vcmp.eq.f32.partialorder %v777, 8.507059e+37
        %v779 = vand.u32 %v766, 2147483648
        %v780 = vor.u32 1.1754944e-38, %v779
        %v781 = vsel %vm778, %v780, %v776
        %v782 = vmul.f32 1.0, %v781
        %v783 = vrcp.pop %v767
        %v784 = vmul.f32 %v767, %v783
        %v785 = vsub.f32 1.0, %v784
        %v786 = vmul.f32 %v783, %v785
        %v787 = vadd.f32 %v783, %v786
        %vm788 = vweird.f32 %v767
        %vm789 = vweird.f32 %v783
        %vm790 = vmor %vm788, %vm789
        %v791 = vsel %vm790, %v783, %v787
        %v792 = vand.u32 2147483647, %v767
        %vm793 = vcmp.eq.f32.partialorder %v792, 8.507059e+37
        %v794 = vand.u32 %v767, 2147483648
        %v795 = vor.u32 1.1754944e-38, %v794
        %v796 = vsel %vm793, %v795, %v791
        %v797 = vmul.f32 1.0, %v796
        %v798 = vmul.f32 %v744, %v782
        %v799 = vmul.f32 %v745, %v797
        %v800 = vadd.f32 %v798, %v304
        %v801 = vadd.f32 %v799, %v305
        %v802 = vmul.f32 %v800, 0.70710677
        %v803 = vmul.f32 %v801, 0.70710677
        %804 = vst [vmem:[%s293] sm:$0xff] %v802
        %805 = vst [vmem:[%s293 + $0x8] sm:$0xff] %v803
        %s806 = sand.u32 %s166, 1
        %s807 = scalar_lea.sflag [#allocation5], %s806
        %s808 = sand.u32 %s166, 1
        %s809 = smul.addr %s808, 16
        %s810 = scalar_lea.vmem [#allocation8], %s809
        // Predicated region
        $region53: #{tpu_custom_call.1} parent=43 // pred_check
          %p811 = pneg %p176
        $region54: #{tpu_custom_call.1} parent=43 // pred_check_branch
          %813 = sbr.rel (%p811) target = $region56
        $region55: #{tpu_custom_call.1} parent=43 // pred_region
          %815 = vsyncadd %s807, 0
          %s816 = smul.addr %s22, 2
          %s817 = smul.addr %s816, 8
          %s818 = scalar_lea.hbm %s6, %s817
          %s819 = sshll.u32 %s810, 4
          %s820 = int_to_ptr.vmem [resolvable:$true] %s819
          %s821 = sshll.u32 %s818, 4
          %s822 = int_to_ptr.hbm [resolvable:$true] %s821
          %827 = dma.vmem_to_hbm [thread:$0]  %s820, 256, %s822, %s807, 128, 128, 8
        $region56: #{tpu_custom_call.1} parent=43 // pred_fallthru
          _
      $region44: #{tpu_custom_call.1} parent=5 // pred_fallthru
        _
      %p828 = scmp.le.s32.totalorder 2, %s17
      // Predicated region
      $region57: #{tpu_custom_call.1} parent=5 // pred_check
        %p829 = pneg %p828
      $region58: #{tpu_custom_call.1} parent=5 // pred_check_branch
        %831 = sbr.rel (%p829) target = $region60
      $region59: #{tpu_custom_call.1} parent=5 // pred_region
        %s832 = ssub.s32 %s17, 2
        // Predicated region
        $region61: #{tpu_custom_call.1} parent=59 // pred_check
          %p833 = pneg %p182
        $region62: #{tpu_custom_call.1} parent=59 // pred_check_branch
          %835 = sbr.rel (%p833) target = $region64
        $region63: #{tpu_custom_call.1} parent=59 // pred_region
          %s836 = sand.u32 %s167, 1
          %s837 = scalar_lea.sflag [#allocation5], %s836
          %s838 = sand.u32 %s167, 1
          %s839 = smul.addr %s838, 16
          %s840 = scalar_lea.vmem [#allocation8], %s839
          %842 = dma.done %s837, 256
        $region64: #{tpu_custom_call.1} parent=59 // pred_fallthru
          _
      $region60: #{tpu_custom_call.1} parent=5 // pred_fallthru
        _
    $region6: #{tpu_custom_call.1} parent=1 // loop_footer
      %s21 = sadd.s32 1, %s17
    $region7: #{tpu_custom_call.1} parent=1 // loop_footer_branch
      %16 = sbr.rel target = $region3
    $region8: #{tpu_custom_call.1} parent=1 // loop_exit
      _
    %843 = vsyncpa [#allocation4], 1
    %s844 = scalar_lea.sflag [#allocation4], 1
    %845 = vsyncpa %s844, 1
    %846 = vsyncpa [#allocation7], 1
    %847 = vsyncpa [#allocation5], 1
    %s848 = scalar_lea.sflag [#allocation5], 1
    %849 = vsyncpa %s848, 1

</llo_original>
